<compile_context>
chip_gen: v7x
topology: tpu7x:2x2x1
jax: 0.10.0
libtpu: 0.0.40
codegen_flags: <defaults>
</compile_context>

<pallas_src>
import jax
import jax.numpy as jnp
from jax.experimental import pallas as pl
from jax.experimental.pallas import tpu as pltpu


def _hardswish(x):
    # torch.nn.Hardswish: x * relu6(x + 3) / 6   (f32 on the VPU)
    return x * jnp.clip(x + 3.0, 0.0, 6.0) * (1.0 / 6.0)


def _cdiv(a, b):
    return (a + b - 1) // b


def _round_up(v, m):
    return _cdiv(v, m) * m


def irb_kernel(x_ref, w1_ref, b1_ref, w2_ref, b2_ref, o_ref, acc_ref):
    # x_ref:  (tm, C_in)      caller dtype (cast in-kernel)
    # w1_ref: (C_in, tk)      matmul dtype     b1_ref: (1, tk)      f32
    # w2_ref: (tk, C_out_p)   matmul dtype     b2_ref: (1, C_out_p) f32
    # o_ref:  (tm, C_out_p)   caller dtype     acc_ref: (tm, C_out_p) f32 scratch
    k = pl.program_id(1)

    @pl.when(k == 0)
    def _():
        acc_ref[...] = jnp.zeros_like(acc_ref)

    # fc1 on this H-chunk: MXU matmul with f32 accumulation.
    x = x_ref[...].astype(w1_ref.dtype)
    h = jnp.dot(x, w1_ref[...], preferred_element_type=jnp.float32) + b1_ref[...]
    # Double Hardswish matches the PyTorch forward (act applied twice).
    h = _hardswish(h)
    h = _hardswish(h)
    # fc2 partial product for this H-chunk, accumulated in f32.
    acc_ref[...] += jnp.dot(h.astype(w2_ref.dtype), w2_ref[...],
                            preferred_element_type=jnp.float32)

    @pl.when(k == pl.num_programs(1) - 1)
    def _():
        o_ref[...] = (acc_ref[...] + b2_ref[...]).astype(o_ref.dtype)


def prepare_irb_params(w1, b1, w2, b2, *, matmul_dtype=jnp.bfloat16):
    """One-time weight preprocessing (do this at model init, not per call).

    w1: (C_in, H), b1: (H,), w2: (H, C_out), b2: (C_out,).
    Pads H and C_out to multiples of 128 (zero pad == identity) and casts the
    matmul operands; biases stay f32.
    """
    C_in, H = w1.shape
    C_out = w2.shape[1]
    H_p = _round_up(H, 128)
    C_out_p = _round_up(C_out, 128)
    w1c = jnp.pad(w1.astype(matmul_dtype), ((0, 0), (0, H_p - H)))
    w2c = jnp.pad(w2.astype(matmul_dtype), ((0, H_p - H), (0, C_out_p - C_out)))
    b1f = jnp.pad(b1.astype(jnp.float32).reshape(1, H), ((0, 0), (0, H_p - H)))
    b2f = jnp.pad(b2.astype(jnp.float32).reshape(1, C_out),
                  ((0, 0), (0, C_out_p - C_out)))
    return dict(w1=w1c, b1=b1f, w2=w2c, b2=b2f,
                C_in=C_in, H=H, C_out=C_out, H_p=H_p, C_out_p=C_out_p,
                matmul_dtype=jnp.dtype(matmul_dtype))


def irb_forward(x, params, *, target_tm=256, target_tk=512):
    """x: (B, N, C_in) channel-last tokens; params from prepare_irb_params."""
    B, N, C_in = x.shape
    assert C_in == params["C_in"]
    H_p, C_out, C_out_p = params["H_p"], params["C_out"], params["C_out_p"]
    out_dtype = x.dtype
    M = B * N

    # --- row tile: minimize padded-row waste, keep >=2 steps for v7x's 2 TCs.
    n_row = _cdiv(M, max(16, target_tm))
    if M >= 32:
        n_row = max(n_row, 2)
    tm = max(8, min(_round_up(_cdiv(M, n_row), 16), _round_up(M, 8)))
    n_row = _cdiv(M, tm)

    # --- H chunk: largest multiple of 128 that divides H_p and is <= target
    # (must divide exactly: partial blocks on a reduction axis would read junk).
    tk = 128
    d = 128
    tk_cap = min(H_p, max(128, _round_up(target_tk, 128)))
    while d <= tk_cap:
        if H_p % d == 0:
            tk = d
        d += 128
    n_k = H_p // tk

    x_bytes = jnp.dtype(x.dtype).itemsize
    mm_bytes = params["matmul_dtype"].itemsize
    out_bytes = jnp.dtype(out_dtype).itemsize

    # --- VMEM budget: double-buffered tiles + f32 accumulator + intermediates.
    need = (2 * tm * C_in * x_bytes                      # x row tile
            + 2 * (C_in * tk + tk * C_out_p) * mm_bytes  # weight H-chunks
            + 2 * (tk + C_out_p) * 4                     # biases (f32)
            + 2 * tm * C_out_p * out_bytes               # output tile
            + tm * C_out_p * 4                           # f32 accumulator scratch
            + 2 * tm * tk * 4)                           # f32 hidden-chunk temps
    vmem_limit = need + (4 << 20)
    try:
        info = pltpu.get_tpu_info()
        vmem_cap = int(getattr(info, "vmem_capacity_bytes", 64 << 20))
    except Exception:  # pragma: no cover - conservative fallback
        vmem_cap = 64 << 20
    vmem_limit = int(max(min(vmem_limit, vmem_cap - (8 << 20)), 8 << 20))

    M_eff = n_row * tm
    flops = 2 * M_eff * C_in * H_p + 2 * M_eff * H_p * C_out_p
    bytes_accessed = (M * C_in * x_bytes
                      + n_row * (C_in * H_p + H_p * C_out_p) * mm_bytes
                      + (H_p + C_out_p) * 4
                      + M * C_out_p * out_bytes)
    cost = pl.CostEstimate(flops=int(flops), transcendentals=0,
                           bytes_accessed=int(bytes_accessed))

    out2d = pl.pallas_call(
        irb_kernel,
        out_shape=jax.ShapeDtypeStruct((M, C_out_p), out_dtype),
        grid_spec=pltpu.PrefetchScalarGridSpec(
            num_scalar_prefetch=0,
            grid=(n_row, n_k),
            in_specs=[
                pl.BlockSpec((tm, C_in), lambda i, k: (i, 0)),      # x rows (no pad/cast)
                pl.BlockSpec((C_in, tk), lambda i, k: (0, k)),      # fc1 weight chunk
                pl.BlockSpec((1, tk), lambda i, k: (0, k)),         # fc1 bias chunk (f32)
                pl.BlockSpec((tk, C_out_p), lambda i, k: (k, 0)),   # fc2 weight chunk
                pl.BlockSpec((1, C_out_p), lambda i, k: (0, 0)),    # fc2 bias (f32)
            ],
            out_specs=pl.BlockSpec((tm, C_out_p), lambda i, k: (i, 0)),
            scratch_shapes=[pltpu.VMEM((tm, C_out_p), jnp.float32)],
        ),
        compiler_params=pltpu.CompilerParams(
            dimension_semantics=("parallel", "arbitrary"),
            vmem_limit_bytes=vmem_limit,
        ),
        cost_estimate=cost,
    )(x.reshape(M, C_in), params["w1"], params["b1"], params["w2"], params["b2"])

    # TODO(synk): if rows alone can't give >=2 grid steps on v7x, a second
    # "parallel" axis over C_out blocks would keep both TensorCores busy.
    out2d = out2d if C_out_p == C_out else out2d[:, :C_out]
    return out2d.reshape(B, N, C_out)


def reference_irb(x, w1, b1, w2, b2):
    h = jnp.einsum("bnc,ch->bnh", x, w1) + b1
    h = _hardswish(h)
    h = _hardswish(h)
    return jnp.einsum("bnh,ho->bno", h, w2) + b2


if __name__ == "__main__":
    # Small shapes consistent with the module: channel-last token features.
    B, N = 2, 8
    in_features = 32
    hidden_features = 64
    out_features = 32

    key = jax.random.PRNGKey(0)
    kx, kw1, kb1, kw2, kb2 = jax.random.split(key, 5)

    x = jax.random.normal(kx, (B, N, in_features), dtype=jnp.float32)

    # PyTorch Linear stores weight as (out, in); pre-transpose to (in, out).
    w1 = jax.random.normal(kw1, (hidden_features, in_features), dtype=jnp.float32) * 0.05
    b1 = jax.random.normal(kb1, (hidden_features,), dtype=jnp.float32) * 0.05
    w2 = jax.random.normal(kw2, (out_features, hidden_features), dtype=jnp.float32) * 0.05
    b2 = jax.random.normal(kb2, (out_features,), dtype=jnp.float32) * 0.05

    w1_t = w1.T  # (in, hidden)
    w2_t = w2.T  # (hidden, out)

    ref = reference_irb(x, w1_t, b1, w2_t, b2)

    # Exact path: f32 matmul operands (parity with the PyTorch f32 reference).
    params_f32 = prepare_irb_params(w1_t, b1, w2_t, b2, matmul_dtype=jnp.float32)
    out_f32 = jax.block_until_ready(irb_forward(x, params_f32))
    assert out_f32.shape == (B, N, out_features)
    assert jnp.allclose(out_f32, ref, atol=1e-5, rtol=1e-5), "f32 path mismatch"

    # Fast path: bf16 MXU operands with f32 accumulation (inference default).
    params_bf16 = prepare_irb_params(w1_t, b1, w2_t, b2, matmul_dtype=jnp.bfloat16)
    out_bf16 = jax.block_until_ready(irb_forward(x, params_bf16))
    assert out_bf16.shape == (B, N, out_features)
    assert jnp.allclose(out_bf16, ref, atol=3e-2, rtol=3e-2), "bf16 path mismatch"

    print("KERNEL_OK")
</pallas_src>

<mosaic_0001>
module attributes {stable_mosaic.version = 11 : i64} {
  func.func @irb_kernel(%arg0: i32, %arg1: i32, %arg2: memref<16x32xf32, #tpu.memory_space<vmem>>, %arg3: memref<32x128xf32, #tpu.memory_space<vmem>>, %arg4: memref<1x128xf32, #tpu.memory_space<vmem>>, %arg5: memref<128x128xf32, #tpu.memory_space<vmem>>, %arg6: memref<1x128xf32, #tpu.memory_space<vmem>>, %arg7: memref<16x128xf32, #tpu.memory_space<vmem>>, %arg8: memref<16x128xf32, #tpu.memory_space<vmem>>) attributes {dimension_semantics = [#tpu.dimension_semantics<parallel>, #tpu.dimension_semantics<arbitrary>], iteration_bounds = array<i64: 1, 1>, scalar_prefetch = 0 : i64, scratch_operands = 1 : i64, tpu.core_type = #tpu.core_type<tc>, window_params = [{transform_indices = @transform_0, window_bounds = array<i64: 16, 32>}, {transform_indices = @transform_1, window_bounds = array<i64: 32, 128>}, {transform_indices = @transform_2, window_bounds = array<i64: 1, 128>}, {transform_indices = @transform_3, window_bounds = array<i64: 128, 128>}, {pipeline_mode = #tpu.pipeline_mode<synchronous>, transform_indices = @transform_4, window_bounds = array<i64: 1, 128>}, {transform_indices = @transform_5, window_bounds = array<i64: 16, 128>}]} {
    %c0_i32 = arith.constant 0 : i32
    %0 = arith.cmpi eq, %arg1, %c0_i32 : i32
    %1 = arith.extui %0 : i1 to i32
    %c0_i32_0 = arith.constant 0 : i32
    %2 = arith.cmpi ne, %1, %c0_i32_0 : i32
    scf.if %2 {
      %cst_23 = arith.constant 0.000000e+00 : f32
      %35 = vector.broadcast %cst_23 : f32 to vector<16x128xf32>
      %c0_24 = arith.constant 0 : index
      %c0_25 = arith.constant 0 : index
      %36 = vector.load %arg8[%c0_24, %c0_25] : memref<16x128xf32, #tpu.memory_space<vmem>>, vector<16x128xf32>
      tpu.vector_store %arg8[%c0_24, %c0_25], %35 {strides = array<i32>} : memref<16x128xf32, #tpu.memory_space<vmem>>, vector<16x128xf32>,
    } else {
    }
    %c0 = arith.constant 0 : index
    %c0_1 = arith.constant 0 : index
    %3 = vector.load %arg2[%c0, %c0_1] : memref<16x32xf32, #tpu.memory_space<vmem>>, vector<16x32xf32>
    %c0_2 = arith.constant 0 : index
    %c0_3 = arith.constant 0 : index
    %4 = vector.load %arg3[%c0_2, %c0_3] : memref<32x128xf32, #tpu.memory_space<vmem>>, vector<32x128xf32>
    %cst = arith.constant dense<0.000000e+00> : vector<16x128xf32>
    %5 = tpu.matmul %3, %4, %cst {dimension_numbers = #tpu.dot_dimension_numbers<[1], [0], [0], [1], [0, 0, 1, 1], [], []>} : vector<16x32xf32>, vector<32x128xf32>, vector<16x128xf32> -> vector<16x128xf32>
    %c0_4 = arith.constant 0 : index
    %c0_5 = arith.constant 0 : index
    %6 = vector.load %arg4[%c0_4, %c0_5] : memref<1x128xf32, #tpu.memory_space<vmem>>, vector<1x128xf32>
    %7 = vector.broadcast %6 : vector<1x128xf32> to vector<16x128xf32>
    %8 = arith.addf %5, %7 : vector<16x128xf32>
    %cst_6 = arith.constant 3.000000e+00 : f32
    %9 = vector.broadcast %cst_6 : f32 to vector<16x128xf32>
    %10 = arith.addf %8, %9 : vector<16x128xf32>
    %cst_7 = arith.constant 0.000000e+00 : f32
    %cst_8 = arith.constant 6.000000e+00 : f32
    %11 = vector.broadcast %cst_7 : f32 to vector<16x128xf32>
    %12 = arith.maximumf %11, %10 : vector<16x128xf32>
    %13 = vector.broadcast %cst_8 : f32 to vector<16x128xf32>
    %14 = arith.minimumf %13, %12 : vector<16x128xf32>
    %15 = arith.mulf %8, %14 : vector<16x128xf32>
    %cst_9 = arith.constant 0.166666672 : f32
    %16 = vector.broadcast %cst_9 : f32 to vector<16x128xf32>
    %17 = arith.mulf %15, %16 : vector<16x128xf32>
    %cst_10 = arith.constant 3.000000e+00 : f32
    %18 = vector.broadcast %cst_10 : f32 to vector<16x128xf32>
    %19 = arith.addf %17, %18 : vector<16x128xf32>
    %cst_11 = arith.constant 0.000000e+00 : f32
    %cst_12 = arith.constant 6.000000e+00 : f32
    %20 = vector.broadcast %cst_11 : f32 to vector<16x128xf32>
    %21 = arith.maximumf %20, %19 : vector<16x128xf32>
    %22 = vector.broadcast %cst_12 : f32 to vector<16x128xf32>
    %23 = arith.minimumf %22, %21 : vector<16x128xf32>
    %24 = arith.mulf %17, %23 : vector<16x128xf32>
    %cst_13 = arith.constant 0.166666672 : f32
    %25 = vector.broadcast %cst_13 : f32 to vector<16x128xf32>
    %26 = arith.mulf %24, %25 : vector<16x128xf32>
    %c0_14 = arith.constant 0 : index
    %c0_15 = arith.constant 0 : index
    %27 = vector.load %arg8[%c0_14, %c0_15] : memref<16x128xf32, #tpu.memory_space<vmem>>, vector<16x128xf32>
    %c0_16 = arith.constant 0 : index
    %c0_17 = arith.constant 0 : index
    %28 = vector.load %arg5[%c0_16, %c0_17] : memref<128x128xf32, #tpu.memory_space<vmem>>, vector<128x128xf32>
    %cst_18 = arith.constant dense<0.000000e+00> : vector<16x128xf32>
    %29 = tpu.matmul %26, %28, %cst_18 {dimension_numbers = #tpu.dot_dimension_numbers<[1], [0], [0], [1], [0, 0, 1, 1], [], []>} : vector<16x128xf32>, vector<128x128xf32>, vector<16x128xf32> -> vector<16x128xf32>
    %30 = arith.addf %27, %29 : vector<16x128xf32>
    %c0_19 = arith.constant 0 : index
    %c0_20 = arith.constant 0 : index
    %31 = vector.load %arg8[%c0_19, %c0_20] : memref<16x128xf32, #tpu.memory_space<vmem>>, vector<16x128xf32>
    tpu.vector_store %arg8[%c0_19, %c0_20], %30 {strides = array<i32>} : memref<16x128xf32, #tpu.memory_space<vmem>>, vector<16x128xf32>,
    %c0_i32_21 = arith.constant 0 : i32
    %32 = arith.cmpi eq, %arg1, %c0_i32_21 : i32
    %33 = arith.extui %32 : i1 to i32
    %c0_i32_22 = arith.constant 0 : i32
    %34 = arith.cmpi ne, %33, %c0_i32_22 : i32
    scf.if %34 {
      %c0_23 = arith.constant 0 : index
      %c0_24 = arith.constant 0 : index
      %35 = vector.load %arg8[%c0_23, %c0_24] : memref<16x128xf32, #tpu.memory_space<vmem>>, vector<16x128xf32>
      %c0_25 = arith.constant 0 : index
      %c0_26 = arith.constant 0 : index
      %36 = vector.load %arg6[%c0_25, %c0_26] : memref<1x128xf32, #tpu.memory_space<vmem>>, vector<1x128xf32>
      %37 = vector.broadcast %36 : vector<1x128xf32> to vector<16x128xf32>
      %38 = arith.addf %35, %37 : vector<16x128xf32>
      %c0_27 = arith.constant 0 : index
      %c0_28 = arith.constant 0 : index
      %39 = vector.load %arg7[%c0_27, %c0_28] : memref<16x128xf32, #tpu.memory_space<vmem>>, vector<16x128xf32>
      tpu.vector_store %arg7[%c0_27, %c0_28], %38 {strides = array<i32>} : memref<16x128xf32, #tpu.memory_space<vmem>>, vector<16x128xf32>,
    } else {
    }
    return
  }
  func.func @transform_0(%arg0: i32, %arg1: i32) -> (i32, i32) {
    %c0_i32 = arith.constant 0 : i32
    %c0_i32_0 = arith.constant 0 : i32
    return %arg0, %c0_i32 : i32, i32
  }
  func.func @transform_1(%arg0: i32, %arg1: i32) -> (i32, i32) {
    %c0_i32 = arith.constant 0 : i32
    %c0_i32_0 = arith.constant 0 : i32
    return %c0_i32, %arg1 : i32, i32
  }
  func.func @transform_2(%arg0: i32, %arg1: i32) -> (i32, i32) {
    %c0_i32 = arith.constant 0 : i32
    %c0_i32_0 = arith.constant 0 : i32
    return %c0_i32, %arg1 : i32, i32
  }
  func.func @transform_3(%arg0: i32, %arg1: i32) -> (i32, i32) {
    %c0_i32 = arith.constant 0 : i32
    %c0_i32_0 = arith.constant 0 : i32
    return %arg1, %c0_i32 : i32, i32
  }
  func.func @transform_4(%arg0: i32, %arg1: i32) -> (i32, i32) {
    %c0_i32 = arith.constant 0 : i32
    %c0_i32_0 = arith.constant 0 : i32
    %c0_i32_1 = arith.constant 0 : i32
    return %c0_i32, %c0_i32_0 : i32, i32
  }
  func.func @transform_5(%arg0: i32, %arg1: i32) -> (i32, i32) {
    %c0_i32 = arith.constant 0 : i32
    %c0_i32_0 = arith.constant 0 : i32
    return %arg0, %c0_i32 : i32, i32
  }
}

</mosaic_0001>

<llo_original>
// kernel: tpu_custom_call.1
$region0: #{tpu_custom_call.1}
  #allocation0 [shape = 'u32[]', space=smem, size = 0x4, offset = 0x4, fixed_abs, tag = 'smem constant byte address 0x4 - core index']
  #allocation1 [shape = 'u32[144,128]{1,0:T(1,128)}', space=vmem, size = 0x12000, scoped, tag = 'internal scratch']
  #allocation2 [shape = 'f32[16,128]{1,0:T(8,128)}', space=vmem, size = 0x2000, scoped, tag = 'scratch operand']
  %s0 = inlined_call_operand.hbm [shape: f32[16,32], index: 0, kind: input, shape index: {}]
  %s1 = inlined_call_operand.hbm [shape: f32[32,128], index: 1, kind: input, shape index: {}]
  %s2 = inlined_call_operand.vmem [shape: f32[1,128], index: 2, kind: input, shape index: {}]
  %s3 = inlined_call_operand.hbm [shape: f32[128,128], index: 3, kind: input, shape index: {}]
  %s4 = inlined_call_operand.vmem [shape: f32[1,128], index: 4, kind: input, shape index: {}]
  %s5 = inlined_call_operand.hbm [shape: f32[16,128], index: 5, kind: output, shape index: {}]
  %s6 = sld [smem:[#allocation0]]
  $region50: #{tpu_custom_call.1} parent=0
    _
  %s8 = ssub.s32 1, %s6
  %s9 = scalar_select 0, %s8, %s6
  $region1: #{tpu_custom_call.1} parent=0
    #allocation3 [shape = 'u8[8192]{0}', space=vmem, size = 0x2000, scoped, tag = 'input window, operand 0, single buffered']
    #allocation4 [shape = 's32[1]{0}', space=sflag, size = 0x4, scoped, tag = 'scoped memory for tpu_custom_call.1']
    #allocation5 [shape = 's32[1]{0}', space=sflag, size = 0x4, scoped, tag = 'scoped memory for tpu_custom_call.1']
    #allocation6 [shape = 'u8[16384]{0}', space=vmem, size = 0x4000, scoped, tag = 'input window, operand 1, single buffered']
    #allocation7 [shape = 's32[1]{0}', space=sflag, size = 0x4, scoped, tag = 'scoped memory for tpu_custom_call.1']
    #allocation8 [shape = 'u8[65536]{0}', space=vmem, size = 0x10000, scoped, tag = 'input window, operand 3, single buffered']
    #allocation9 [shape = 'u8[8192]{0}', space=vmem, size = 0x2000, scoped, tag = 'output window, operand 0, single buffered']
    %10 = vsyncpa [#allocation4], 0
    %11 = vsyncpa [#allocation7], 0
    %12 = vsyncpa [#allocation5], 0
    // Predicated region
    $region2: #{tpu_custom_call.1} parent=1 // pred_check
      _
    $region3: #{tpu_custom_call.1} parent=1 // pred_check_branch
      %14 = sbr.rel (0) target = $region5
    $region4: #{tpu_custom_call.1} parent=1 // pred_region
      %s16 = ssub.s32 256, 256
      %17 = vsyncadd [#allocation4], %s16
      %s18 = sshll.u32 [#allocation3], 4
      %s19 = int_to_ptr.vmem [resolvable:$true] %s18
      %24 = dma.hbm_to_vmem [thread:$0]  %s0, 256, %s19, [#allocation4], 128, 128, 8
    $region5: #{tpu_custom_call.1} parent=1 // pred_fallthru
      _
    // Predicated region
    $region6: #{tpu_custom_call.1} parent=1 // pred_check
      _
    $region7: #{tpu_custom_call.1} parent=1 // pred_check_branch
      %26 = sbr.rel (0) target = $region9
    $region8: #{tpu_custom_call.1} parent=1 // pred_region
      %s28 = ssub.s32 512, 512
      %29 = vsyncadd [#allocation7], %s28
      %s30 = sshll.u32 [#allocation6], 4
      %s31 = int_to_ptr.vmem [resolvable:$true] %s30
      %36 = dma.hbm_to_vmem [thread:$0]  %s1, 512, %s31, [#allocation7], 128, 128, 8
    $region9: #{tpu_custom_call.1} parent=1 // pred_fallthru
      _
    // Predicated region
    $region10: #{tpu_custom_call.1} parent=1 // pred_check
      _
    $region11: #{tpu_custom_call.1} parent=1 // pred_check_branch
      %38 = sbr.rel (0) target = $region13
    $region12: #{tpu_custom_call.1} parent=1 // pred_region
      _
    $region13: #{tpu_custom_call.1} parent=1 // pred_fallthru
      _
    // Predicated region
    $region14: #{tpu_custom_call.1} parent=1 // pred_check
      _
    $region15: #{tpu_custom_call.1} parent=1 // pred_check_branch
      %40 = sbr.rel (0) target = $region17
    $region16: #{tpu_custom_call.1} parent=1 // pred_region
      %s42 = ssub.s32 2048, 2048
      %43 = vsyncadd [#allocation7], %s42
      %s44 = sshll.u32 [#allocation8], 4
      %s45 = int_to_ptr.vmem [resolvable:$true] %s44
      %50 = dma.hbm_to_vmem [thread:$0]  %s3, 2048, %s45, [#allocation7], 128, 128, 8
    $region17: #{tpu_custom_call.1} parent=1 // pred_fallthru
      _
    // Predicated region
    $region18: #{tpu_custom_call.1} parent=1 // pred_check
      _
    $region19: #{tpu_custom_call.1} parent=1 // pred_check_branch
      %52 = sbr.rel (0) target = $region21
    $region20: #{tpu_custom_call.1} parent=1 // pred_region
      _
    $region21: #{tpu_custom_call.1} parent=1 // pred_fallthru
      _
    // Predicated region
    $region22: #{tpu_custom_call.1} parent=1 // pred_check
      _
    $region23: #{tpu_custom_call.1} parent=1 // pred_check_branch
      %54 = sbr.rel (0) target = $region25
    $region24: #{tpu_custom_call.1} parent=1 // pred_region
      %55 = dma.done [#allocation4], 256
    $region25: #{tpu_custom_call.1} parent=1 // pred_fallthru
      _
    // Predicated region
    $region26: #{tpu_custom_call.1} parent=1 // pred_check
      _
    $region27: #{tpu_custom_call.1} parent=1 // pred_check_branch
      %57 = sbr.rel (0) target = $region29
    $region28: #{tpu_custom_call.1} parent=1 // pred_region
      %58 = dma.done [#allocation7], 512
    $region29: #{tpu_custom_call.1} parent=1 // pred_fallthru
      _
    // Predicated region
    $region30: #{tpu_custom_call.1} parent=1 // pred_check
      _
    $region31: #{tpu_custom_call.1} parent=1 // pred_check_branch
      %60 = sbr.rel (0) target = $region33
    $region32: #{tpu_custom_call.1} parent=1 // pred_region
      %61 = dma.done [#allocation7], 2048
    $region33: #{tpu_custom_call.1} parent=1 // pred_fallthru
      _
    %p62 = scmp.eq.s32.totalorder 0, 0
    // Predicated region
    $region34: #{tpu_custom_call.1} parent=1 // pred_check
      %p63 = pneg %p62
    $region35: #{tpu_custom_call.1} parent=1 // pred_check_branch
      %65 = sbr.rel (%p63) target = $region37
    $region36: #{tpu_custom_call.1} parent=1 // pred_region
      %66 = vst [vmem:[#allocation2] sm:$0xff] 0.0
      %67 = vst [vmem:[#allocation2 + $0x8] sm:$0xff] 0.0
    $region37: #{tpu_custom_call.1} parent=1 // pred_fallthru
      _
    %v68 = vld [vmem:[#allocation3] sm:$0xff]
    %v69 = vld [vmem:[#allocation3 + $0x8] sm:$0xff]
    %v70 = vld [vmem:[#allocation6] sm:$0xff]
    %v71 = vld [vmem:[#allocation6 + $0x8] sm:$0xff]
    %v72 = vld [vmem:[#allocation6 + $0x10] sm:$0xff]
    %v73 = vld [vmem:[#allocation6 + $0x18] sm:$0xff]
    %v74 = vld [vmem:[%s2] sm:$0x1]
    %v76 = vlaneseq
    %v77 = vshrl.u32 %v76, 7
    %v78 = vsub.s32 0, %v77
    %v79 = vrot.slane %v74, %v78
    %vm81 = vcmask 261120
    %v83 = vsel %vm81, %v68, 0
    %v86 = vsel %vm81, %v69, 0
    %88 = vmatprep.subr.mxu0 0.0
    %89 = vmatpush1.msra.mxu0 %v70
    %90 = vmatprep.subr.mxu0 0.0
    %91 = vmatpush1.msra.mxu0 %v71
    %92 = vmatprep.subr.mxu0 0.0
    %93 = vmatpush1.msra.mxu0 %v72
    %94 = vmatprep.subr.mxu0 0.0
    %95 = vmatpush1.msra.mxu0 %v73
    %96 = vmatprep.subr.mxu0 0.0
    %97 = vmatpush1.msra.mxu0 0.0
    %98 = vmatprep.subr.mxu0 0.0
    %99 = vmatpush1.msra.mxu0 0.0
    %100 = vmatprep.subr.mxu0 0.0
    %101 = vmatpush1.msra.mxu0 0.0
    %102 = vmatprep.subr.mxu0 0.0
    %103 = vmatpush1.msra.mxu0 0.0
    %104 = vmatprep.subr.mxu0 0.0
    %105 = vmatpush1.msra.mxu0 0.0
    %106 = vmatprep.subr.mxu0 0.0
    %107 = vmatpush1.msra.mxu0 0.0
    %108 = vmatprep.subr.mxu0 0.0
    %109 = vmatpush1.msra.mxu0 0.0
    %110 = vmatprep.subr.mxu0 0.0
    %111 = vmatpush1.msra.mxu0 0.0
    %112 = vmatprep.subr.mxu0 0.0
    %113 = vmatpush1.msra.mxu0 0.0
    %114 = vmatprep.subr.mxu0 0.0
    %115 = vmatpush1.msra.mxu0 0.0
    %116 = vmatprep.subr.mxu0 0.0
    %117 = vmatpush1.msra.mxu0 0.0
    %118 = vmatprep.subr.mxu0 0.0
    %119 = vmatpush1.msra.mxu0 0.0
    %120 = vmatprep.subr.mxu0 0.0
    %121 = vmatpush1.msra.mxu0 0.0
    %122 = vmatprep.subr.mxu0 0.0
    %123 = vmatpush1.msra.mxu0 0.0
    %124 = vmatprep.subr.mxu0 0.0
    %125 = vmatpush1.msra.mxu0 0.0
    %126 = vmatprep.subr.mxu0 0.0
    %127 = vmatpush1.msra.mxu0 0.0
    %128 = vmatprep.subr.mxu0 0.0
    %129 = vmatpush1.msra.mxu0 0.0
    %130 = vmatprep.subr.mxu0 0.0
    %131 = vmatpush1.msra.mxu0 0.0
    %132 = vmatprep.subr.mxu0 0.0
    %133 = vmatpush1.msra.mxu0 0.0
    %134 = vmatprep.subr.mxu0 0.0
    %135 = vmatpush1.msra.mxu0 0.0
    %136 = vmatprep.subr.mxu0 0.0
    %137 = vmatpush1.msra.mxu0 0.0
    %138 = vmatprep.subr.mxu0 0.0
    %139 = vmatpush1.msra.mxu0 0.0
    %140 = vmatprep.subr.mxu0 0.0
    %141 = vmatpush1.msra.mxu0 0.0
    %142 = vmatprep.subr.mxu0 0.0
    %143 = vmatpush1.msra.mxu0 0.0
    %144 = vmatprep.subr.mxu0 0.0
    %145 = vmatpush1.msra.mxu0 0.0
    %146 = vmatprep.subr.mxu0 0.0
    %147 = vmatpush1.msra.mxu0 0.0
    %148 = vmatprep.subr.mxu0 0.0
    %149 = vmatpush1.msra.mxu0 0.0
    %150 = vmatprep.subr.mxu0 0.0
    %151 = vmatpush1.msra.mxu0 0.0
    %152 = vmatprep.mubr.f32.mxu0 0.0
    %153 = vmatmul.mubr.f32.gmra.mrb[0].mxu0 %v83
    %v154 = vpop.f32.mrb[0].mxu0
    %v155 = vadd.f32 %v79, %v154
    %v156 = vpop.f32.mrb[0].mxu0
    %157 = vmatprep.mubr.f32.mxu0 0.0
    %158 = vmatmul.mubr.f32.gmra.mrb[0].mxu0 %v86
    %v159 = vpop.f32.mrb[0].mxu0
    %v160 = vadd.f32 %v79, %v159
    %v161 = vpop.f32.mrb[0].mxu0
    %162 = vdwg.mxu0
    %v163 = vadd.f32 %v155, 3.0
    %v164 = vadd.f32 %v160, 3.0
    %v165 = vmax.f32 %v163, 0.0
    %v166 = vmax.f32 %v164, 0.0
    %v167 = vmin.f32 %v165, 6.0
    %v168 = vmin.f32 %v166, 6.0
    %v169 = vmul.f32 %v155, %v167
    %v170 = vmul.f32 %v160, %v168
    %v171 = vmul.f32 %v169, 0.16666667
    %v172 = vmul.f32 %v170, 0.16666667
    %v173 = vadd.f32 %v171, 3.0
    %v174 = vadd.f32 %v172, 3.0
    %v175 = vmax.f32 %v173, 0.0
    %v176 = vmax.f32 %v174, 0.0
    %v177 = vmin.f32 %v175, 6.0
    %v178 = vmin.f32 %v176, 6.0
    %v179 = vmul.f32 %v171, %v177
    %v180 = vmul.f32 %v172, %v178
    %v181 = vmul.f32 %v179, 0.16666667
    %v182 = vmul.f32 %v180, 0.16666667
    %v183 = vld [vmem:[#allocation2] sm:$0xff]
    %v184 = vld [vmem:[#allocation2 + $0x8] sm:$0xff]
    %v185 = vld [vmem:[#allocation8] sm:$0xff]
    %v186 = vld [vmem:[#allocation8 + $0x8] sm:$0xff]
    %v187 = vld [vmem:[#allocation8 + $0x10] sm:$0xff]
    %v188 = vld [vmem:[#allocation8 + $0x18] sm:$0xff]
    %v189 = vld [vmem:[#allocation8 + $0x20] sm:$0xff]
    %v190 = vld [vmem:[#allocation8 + $0x28] sm:$0xff]
    %v191 = vld [vmem:[#allocation8 + $0x30] sm:$0xff]
    %v192 = vld [vmem:[#allocation8 + $0x38] sm:$0xff]
    %v193 = vld [vmem:[#allocation8 + $0x40] sm:$0xff]
    %v194 = vld [vmem:[#allocation8 + $0x48] sm:$0xff]
    %v195 = vld [vmem:[#allocation8 + $0x50] sm:$0xff]
    %v196 = vld [vmem:[#allocation8 + $0x58] sm:$0xff]
    %v197 = vld [vmem:[#allocation8 + $0x60] sm:$0xff]
    %v198 = vld [vmem:[#allocation8 + $0x68] sm:$0xff]
    %v199 = vld [vmem:[#allocation8 + $0x70] sm:$0xff]
    %v200 = vld [vmem:[#allocation8 + $0x78] sm:$0xff]
    %201 = vmatprep.subr.mxu0 0.0
    %202 = vmatpush1.msra.mxu0 %v185
    %203 = vmatprep.subr.mxu0 0.0
    %204 = vmatpush1.msra.mxu0 %v186
    %205 = vmatprep.subr.mxu0 0.0
    %206 = vmatpush1.msra.mxu0 %v187
    %207 = vmatprep.subr.mxu0 0.0
    %208 = vmatpush1.msra.mxu0 %v188
    %209 = vmatprep.subr.mxu0 0.0
    %210 = vmatpush1.msra.mxu0 %v189
    %211 = vmatprep.subr.mxu0 0.0
    %212 = vmatpush1.msra.mxu0 %v190
    %213 = vmatprep.subr.mxu0 0.0
    %214 = vmatpush1.msra.mxu0 %v191
    %215 = vmatprep.subr.mxu0 0.0
    %216 = vmatpush1.msra.mxu0 %v192
    %217 = vmatprep.subr.mxu0 0.0
    %218 = vmatpush1.msra.mxu0 %v193
    %219 = vmatprep.subr.mxu0 0.0
    %220 = vmatpush1.msra.mxu0 %v194
    %221 = vmatprep.subr.mxu0 0.0
    %222 = vmatpush1.msra.mxu0 %v195
    %223 = vmatprep.subr.mxu0 0.0
    %224 = vmatpush1.msra.mxu0 %v196
    %225 = vmatprep.subr.mxu0 0.0
    %226 = vmatpush1.msra.mxu0 %v197
    %227 = vmatprep.subr.mxu0 0.0
    %228 = vmatpush1.msra.mxu0 %v198
    %229 = vmatprep.subr.mxu0 0.0
    %230 = vmatpush1.msra.mxu0 %v199
    %231 = vmatprep.subr.mxu0 0.0
    %232 = vmatpush1.msra.mxu0 %v200
    %233 = vmatprep.subr.mxu0 0.0
    %234 = vmatpush1.msra.mxu0 0.0
    %235 = vmatprep.subr.mxu0 0.0
    %236 = vmatpush1.msra.mxu0 0.0
    %237 = vmatprep.subr.mxu0 0.0
    %238 = vmatpush1.msra.mxu0 0.0
    %239 = vmatprep.subr.mxu0 0.0
    %240 = vmatpush1.msra.mxu0 0.0
    %241 = vmatprep.subr.mxu0 0.0
    %242 = vmatpush1.msra.mxu0 0.0
    %243 = vmatprep.subr.mxu0 0.0
    %244 = vmatpush1.msra.mxu0 0.0
    %245 = vmatprep.subr.mxu0 0.0
    %246 = vmatpush1.msra.mxu0 0.0
    %247 = vmatprep.subr.mxu0 0.0
    %248 = vmatpush1.msra.mxu0 0.0
    %249 = vmatprep.subr.mxu0 0.0
    %250 = vmatpush1.msra.mxu0 0.0
    %251 = vmatprep.subr.mxu0 0.0
    %252 = vmatpush1.msra.mxu0 0.0
    %253 = vmatprep.subr.mxu0 0.0
    %254 = vmatpush1.msra.mxu0 0.0
    %255 = vmatprep.subr.mxu0 0.0
    %256 = vmatpush1.msra.mxu0 0.0
    %257 = vmatprep.subr.mxu0 0.0
    %258 = vmatpush1.msra.mxu0 0.0
    %259 = vmatprep.subr.mxu0 0.0
    %260 = vmatpush1.msra.mxu0 0.0
    %261 = vmatprep.subr.mxu0 0.0
    %262 = vmatpush1.msra.mxu0 0.0
    %263 = vmatprep.subr.mxu0 0.0
    %264 = vmatpush1.msra.mxu0 0.0
    %265 = vmatprep.mubr.f32.mxu0 0.0
    %266 = vmatmul.mubr.f32.gmra.mrb[0].mxu0 %v181
    %v267 = vpop.f32.mrb[0].mxu0
    %v268 = vadd.f32 0.0, %v267
    %v269 = vpop.f32.mrb[0].mxu0
    %270 = vmatprep.mubr.f32.mxu0 0.0
    %271 = vmatmul.mubr.f32.gmra.mrb[0].mxu0 %v182
    %v272 = vpop.f32.mrb[0].mxu0
    %v273 = vadd.f32 0.0, %v272
    %v274 = vpop.f32.mrb[0].mxu0
    %275 = vdwg.mxu0
    %v276 = vadd.f32 %v183, %v268
    %v277 = vadd.f32 %v184, %v273
    %278 = vst [vmem:[#allocation2] sm:$0xff] %v276
    %279 = vst [vmem:[#allocation2 + $0x8] sm:$0xff] %v277
    // Predicated region
    $region38: #{tpu_custom_call.1} parent=1 // pred_check
      %p280 = pneg %p62
    $region39: #{tpu_custom_call.1} parent=1 // pred_check_branch
      %282 = sbr.rel (%p280) target = $region41
    $region40: #{tpu_custom_call.1} parent=1 // pred_region
      %v283 = vld [vmem:[#allocation2] sm:$0xff]
      %v284 = vld [vmem:[#allocation2 + $0x8] sm:$0xff]
      %v285 = vld [vmem:[%s4] sm:$0x1]
      %v287 = vlaneseq
      %v288 = vshrl.u32 %v287, 7
      %v289 = vsub.s32 0, %v288
      %v290 = vrot.slane %v285, %v289
      %v292 = vadd.f32 %v283, %v290
      %v293 = vadd.f32 %v284, %v290
      %294 = vst [vmem:[#allocation9] sm:$0xff] %v292
      %295 = vst [vmem:[#allocation9 + $0x8] sm:$0xff] %v293
    $region41: #{tpu_custom_call.1} parent=1 // pred_fallthru
      _
    // Predicated region
    $region42: #{tpu_custom_call.1} parent=1 // pred_check
      _
    $region43: #{tpu_custom_call.1} parent=1 // pred_check_branch
      %297 = sbr.rel (0) target = $region45
    $region44: #{tpu_custom_call.1} parent=1 // pred_region
      %s299 = ssub.s32 256, 256
      %300 = vsyncadd [#allocation5], %s299
      %s301 = sshll.u32 [#allocation9], 4
      %s302 = int_to_ptr.vmem [resolvable:$true] %s301
      %307 = dma.vmem_to_hbm [thread:$0]  %s302, 256, %s5, [#allocation5], 128, 128, 8
    $region45: #{tpu_custom_call.1} parent=1 // pred_fallthru
      _
    // Predicated region
    $region46: #{tpu_custom_call.1} parent=1 // pred_check
      _
    $region47: #{tpu_custom_call.1} parent=1 // pred_check_branch
      %309 = sbr.rel (0) target = $region49
    $region48: #{tpu_custom_call.1} parent=1 // pred_region
      %310 = dma.done [#allocation5], 256
    $region49: #{tpu_custom_call.1} parent=1 // pred_fallthru
      _
    %311 = vsyncpa [#allocation4], 1
    %312 = vsyncpa [#allocation7], 1
    %313 = vsyncpa [#allocation5], 1

</llo_original>
